<compile_context>
chip_gen: v7x
topology: tpu7x:2x2x1
jax: 0.10.0
libtpu: 0.0.40
codegen_flags: <defaults>
</compile_context>

<pallas_src>
import jax
import jax.numpy as jnp
from jax.experimental import pallas as pl
from jax.experimental.pallas import tpu as pltpu

_ALPHA = 1.5          # focal gamma == 2.0 is implemented as focal * focal
_LANE_TILE = 2048     # lanes per HW tile for the pipelined path (multiple of 128)


def _make_bcnn_kernel(n, hw, tile, tiles_per_core, needs_mask):
    def kernel(out_ref, tgt_ref, w_ref, cw_ref, conf_ref, losses_ref,
               acc_cat, acc_conf, acc_cls, acc_inst, acc_h):
        core = pl.program_id(0)     # "parallel" axis (megacore split of the HW range)
        step = pl.program_id(1)     # "arbitrary" reduction axis over HW tiles

        @pl.when(step == 0)
        def _init():
            acc_cat[...] = jnp.zeros_like(acc_cat)
            acc_conf[...] = jnp.zeros_like(acc_conf)
            acc_cls[...] = jnp.zeros_like(acc_cls)
            acc_inst[...] = jnp.zeros_like(acc_inst)
            acc_h[...] = jnp.zeros_like(acc_h)

        f32 = jnp.float32
        w = w_ref[...].astype(f32)                           # (N, T)
        w_sq = w * w
        conf = 1.0 + _ALPHA * conf_ref[...].astype(f32)      # (N, T) == 1 + a*input[:,2]

        # Per-pixel sum of conf over the batch (unrolled VPU adds; N is static).
        conf_sum = conf[0:1, :]
        for b in range(1, n):
            conf_sum = conf_sum + conf[b:b + 1, :]           # (1, T)

        # Channels 0..3: category / instance-x / instance-y / confidence diffs.
        d03 = out_ref[:, 0:4, :].astype(f32) - tgt_ref[:, 0:4, :].astype(f32)
        d03 = d03 * d03                                      # (N, 4, T)
        cat_t = w_sq * d03[:, 0, :]
        conf_t = w_sq * d03[:, 3, :]
        # Instance/height reproduce the reference's (N,H,W)*(N,1,H,W)->(N,N,H,W)
        # broadcast via the per-pixel factorization  (sum_j A) * (sum_i conf).
        inst_t = (w * (d03[:, 1, :] + d03[:, 2, :])) * conf_sum

        # Channel 11: height.
        hd = out_ref[:, 11, :].astype(f32) - tgt_ref[:, 11, :].astype(f32)
        h_t = (w * (hd * hd)) * conf_sum

        # Channels 4..9: focal-style class loss.
        o_cls = out_ref[:, 4:10, :].astype(f32)
        t_cls = tgt_ref[:, 4:10, :].astype(f32)
        cw = cw_ref[...].astype(f32)
        focal = 1.0 - o_cls
        cls_t = cw * (focal * focal) * (t_cls * jnp.log(o_cls + 1e-07)) * conf[:, None, :]

        if needs_mask:  # trace-time: only emitted when the tiling doesn't cover HW exactly
            lane = jax.lax.broadcasted_iota(jnp.int32, (1, tile), 1)
            gidx = (core * tiles_per_core + step) * tile + lane
            valid = gidx < hw                                 # (1, T)
            cat_t = jnp.where(valid, cat_t, 0.0)
            conf_t = jnp.where(valid, conf_t, 0.0)
            inst_t = jnp.where(valid, inst_t, 0.0)
            h_t = jnp.where(valid, h_t, 0.0)
            cls_t = jnp.where(valid[:, None, :], cls_t, 0.0)

        acc_cat[...] += cat_t
        acc_conf[...] += conf_t
        acc_cls[...] += cls_t
        acc_inst[...] += inst_t
        acc_h[...] += h_t

        @pl.when(step == tiles_per_core - 1)
        def _finalize():
            cat_l = jnp.sum(acc_cat[...]) * 0.1
            conf_l = jnp.sum(acc_conf[...]) * 0.1
            cls_l = -jnp.sum(acc_cls[...]) * 0.01
            inst_l = jnp.sum(acc_inst[...]) * 5e-05
            h_l = jnp.sum(acc_h[...]) * 7.5e-05

            def row(v):
                return jnp.full((1, 128), v, dtype=f32)

            slab = jnp.concatenate(
                [row(cat_l), row(conf_l), row(cls_l), row(inst_l), row(h_l),
                 jnp.zeros((3, 128), dtype=f32)], axis=0)     # (8, 128)
            losses_ref[0, :, :] = slab

    return kernel


@jax.jit
def bcnn_loss(output, input_, target, weight, class_weight):
    n, c, h, wdim = output.shape
    hw = h * wdim

    # Reshapes to (N, C, HW) are free (contiguous); keep native dtypes (cast in-kernel).
    out3 = output.reshape(n, c, hw)
    tgt3 = target.reshape(n, c, hw)
    cw3 = class_weight.reshape(n, 6, hw)
    w2 = weight.reshape(n, hw)
    # Only channel 2 of `input` is ever read -> slice it out so the kernel DMAs 1/3
    # of the input traffic.
    conf2 = input_.reshape(n, input_.shape[1], hw)[:, 2, :]

    tile = hw if hw <= _LANE_TILE else _LANE_TILE
    n_tiles = pl.cdiv(hw, tile)
    n_cores = 2 if n_tiles >= 2 else 1            # v7x: split the HW range across both TCs
    tiles_per_core = pl.cdiv(n_tiles, n_cores)
    needs_mask = (n_cores * tiles_per_core * tile) != hw

    def hw_block(core, step):
        # Clamp so duplicated / overhanging tiles stay in bounds (their contribution
        # is zeroed by the in-kernel validity mask).
        return jnp.minimum(core * tiles_per_core + step, n_tiles - 1)

    kernel = _make_bcnn_kernel(n, hw, tile, tiles_per_core, needs_mask)

    losses = pl.pallas_call(
        kernel,
        out_shape=jax.ShapeDtypeStruct((n_cores, 8, 128), jnp.float32),
        grid_spec=pltpu.PrefetchScalarGridSpec(
            num_scalar_prefetch=0,
            grid=(n_cores, tiles_per_core),
            in_specs=[
                pl.BlockSpec((n, c, tile), lambda core, s: (0, 0, hw_block(core, s))),
                pl.BlockSpec((n, c, tile), lambda core, s: (0, 0, hw_block(core, s))),
                pl.BlockSpec((n, tile), lambda core, s: (0, hw_block(core, s))),
                pl.BlockSpec((n, 6, tile), lambda core, s: (0, 0, hw_block(core, s))),
                pl.BlockSpec((n, tile), lambda core, s: (0, hw_block(core, s))),
            ],
            out_specs=pl.BlockSpec((1, 8, 128), lambda core, s: (core, 0, 0)),
            scratch_shapes=[
                pltpu.VMEM((n, tile), jnp.float32),      # category partials
                pltpu.VMEM((n, tile), jnp.float32),      # confidence partials
                pltpu.VMEM((n, 6, tile), jnp.float32),   # class partials
                pltpu.VMEM((n, tile), jnp.float32),      # instance partials
                pltpu.VMEM((n, tile), jnp.float32),      # height partials
            ],
        ),
        compiler_params=pltpu.CompilerParams(
            dimension_semantics=("parallel", "arbitrary"),
            vmem_limit_bytes=32 * 1024 * 1024,
        ),
    )(out3, tgt3, w2, cw3, conf2)

    per_core = losses[:, 0:5, 0]                  # (n_cores, 5) partial losses
    total = jnp.sum(per_core, axis=0)
    # TODO(synk): the PyTorch module also print()s class/instance/height losses
    # (host-side I/O inside forward); values are returned instead of printed.
    return total[0], total[1], total[2], total[3], total[4]


def _bcnn_loss_reference(output, inp, target, weight, class_weight):
    """Pure-jnp transcription of the PyTorch forward (exact broadcasting)."""
    gamma, alpha = 2.0, 1.5
    cat_diff = output[:, 0, ...] - target[:, 0, ...]
    category = jnp.sum((weight * cat_diff) ** 2) * 0.1
    conf_diff = output[:, 3, ...] - target[:, 3, ...]
    confidence = jnp.sum((weight * conf_diff) ** 2) * 0.1
    f = 1.0 + alpha * inp[:, 2:3, ...]
    cls = -jnp.sum(class_weight * (1.0 - output[:, 4:10, ...]) ** gamma
                   * (target[:, 4:10, ...] * jnp.log(output[:, 4:10, ...] + 1e-07))
                   * f) * 0.01
    ix = output[:, 1, ...] - target[:, 1, ...]
    iy = output[:, 2, ...] - target[:, 2, ...]
    inst = jnp.sum(weight * ix ** 2 * f + weight * iy ** 2 * f) * 5e-05
    hd = output[:, 11, ...] - target[:, 11, ...]
    height = jnp.sum(weight * hd ** 2 * f) * 7.5e-05
    return category, confidence, cls, inst, height


def _run_case(key, n, c, h, w_sp):
    k1, k2, k3, k4, k5 = jax.random.split(key, 5)
    # Output channels 4:10 feed log(output + 1e-7): keep them in (0, 1).
    output = jax.random.uniform(k1, (n, c, h, w_sp), jnp.float32, minval=1e-3, maxval=0.999)
    input_ = jax.random.uniform(k2, (n, 3, h, w_sp), jnp.float32)
    target = jax.random.uniform(k3, (n, c, h, w_sp), jnp.float32)
    weight = jax.random.uniform(k4, (n, h, w_sp), jnp.float32)
    class_weight = jax.random.uniform(k5, (n, 6, h, w_sp), jnp.float32)

    losses = jax.block_until_ready(
        bcnn_loss(output, input_, target, weight, class_weight))
    ref = _bcnn_loss_reference(output, input_, target, weight, class_weight)
    names = ("category", "confidence", "class", "instance", "height")
    for name, got, want in zip(names, losses, ref):
        if not jnp.allclose(got, want, rtol=2e-4, atol=1e-5):
            raise AssertionError(
                f"[{h}x{w_sp}] {name}: kernel={float(got)} ref={float(want)}")


if __name__ == "__main__":
    key = jax.random.PRNGKey(0)
    k_small, k_big = jax.random.split(key)
    # Small case: single tile, single grid step (fast path through the same code).
    _run_case(k_small, 2, 12, 16, 16)
    # Larger case: exercises the tiled path, the 2-way core split and the masked
    # remainder tile (48*48 = 2304 = 2048 + 256).
    _run_case(k_big, 2, 12, 48, 48)
    print("KERNEL_OK")
</pallas_src>

<mosaic_0001>
module attributes {stable_mosaic.version = 11 : i64} {
  func.func @kernel(%arg0: i32, %arg1: i32, %arg2: memref<2x12x256xf32, #tpu.memory_space<vmem>>, %arg3: memref<2x12x256xf32, #tpu.memory_space<vmem>>, %arg4: memref<2x256xf32, #tpu.memory_space<vmem>>, %arg5: memref<2x6x256xf32, #tpu.memory_space<vmem>>, %arg6: memref<2x256xf32, #tpu.memory_space<vmem>>, %arg7: memref<1x8x128xf32, #tpu.memory_space<vmem>>, %arg8: memref<2x256xf32, #tpu.memory_space<vmem>>, %arg9: memref<2x256xf32, #tpu.memory_space<vmem>>, %arg10: memref<2x6x256xf32, #tpu.memory_space<vmem>>, %arg11: memref<2x256xf32, #tpu.memory_space<vmem>>, %arg12: memref<2x256xf32, #tpu.memory_space<vmem>>) attributes {dimension_semantics = [#tpu.dimension_semantics<parallel>, #tpu.dimension_semantics<arbitrary>], iteration_bounds = array<i64: 1, 1>, scalar_prefetch = 0 : i64, scratch_operands = 5 : i64, tpu.core_type = #tpu.core_type<tc>, window_params = [{transform_indices = @transform_0, window_bounds = array<i64: 2, 12, 256>}, {transform_indices = @transform_1, window_bounds = array<i64: 2, 12, 256>}, {transform_indices = @transform_2, window_bounds = array<i64: 2, 256>}, {transform_indices = @transform_3, window_bounds = array<i64: 2, 6, 256>}, {transform_indices = @transform_4, window_bounds = array<i64: 2, 256>}, {transform_indices = @transform_5, window_bounds = array<i64: 1, 8, 128>}]} {
    %c0_i32 = arith.constant 0 : i32
    %0 = arith.cmpi eq, %arg1, %c0_i32 : i32
    %1 = arith.extui %0 : i1 to i32
    %c0_i32_0 = arith.constant 0 : i32
    %2 = arith.cmpi ne, %1, %c0_i32_0 : i32
    scf.if %2 {
      %cst_50 = arith.constant 0.000000e+00 : f32
      %73 = vector.broadcast %cst_50 : f32 to vector<2x256xf32>
      %c0_51 = arith.constant 0 : index
      %c0_52 = arith.constant 0 : index
      %74 = vector.load %arg8[%c0_51, %c0_52] : memref<2x256xf32, #tpu.memory_space<vmem>>, vector<2x256xf32>
      tpu.vector_store %arg8[%c0_51, %c0_52], %73 {strides = array<i32>} : memref<2x256xf32, #tpu.memory_space<vmem>>, vector<2x256xf32>,
      %cst_53 = arith.constant 0.000000e+00 : f32
      %75 = vector.broadcast %cst_53 : f32 to vector<2x256xf32>
      %c0_54 = arith.constant 0 : index
      %c0_55 = arith.constant 0 : index
      %76 = vector.load %arg9[%c0_54, %c0_55] : memref<2x256xf32, #tpu.memory_space<vmem>>, vector<2x256xf32>
      tpu.vector_store %arg9[%c0_54, %c0_55], %75 {strides = array<i32>} : memref<2x256xf32, #tpu.memory_space<vmem>>, vector<2x256xf32>,
      %cst_56 = arith.constant 0.000000e+00 : f32
      %77 = vector.broadcast %cst_56 : f32 to vector<2x6x256xf32>
      %c0_57 = arith.constant 0 : index
      %c0_58 = arith.constant 0 : index
      %c0_59 = arith.constant 0 : index
      %78 = vector.load %arg10[%c0_57, %c0_58, %c0_59] : memref<2x6x256xf32, #tpu.memory_space<vmem>>, vector<2x6x256xf32>
      tpu.vector_store %arg10[%c0_57, %c0_58, %c0_59], %77 {strides = array<i32>} : memref<2x6x256xf32, #tpu.memory_space<vmem>>, vector<2x6x256xf32>,
      %cst_60 = arith.constant 0.000000e+00 : f32
      %79 = vector.broadcast %cst_60 : f32 to vector<2x256xf32>
      %c0_61 = arith.constant 0 : index
      %c0_62 = arith.constant 0 : index
      %80 = vector.load %arg11[%c0_61, %c0_62] : memref<2x256xf32, #tpu.memory_space<vmem>>, vector<2x256xf32>
      tpu.vector_store %arg11[%c0_61, %c0_62], %79 {strides = array<i32>} : memref<2x256xf32, #tpu.memory_space<vmem>>, vector<2x256xf32>,
      %cst_63 = arith.constant 0.000000e+00 : f32
      %81 = vector.broadcast %cst_63 : f32 to vector<2x256xf32>
      %c0_64 = arith.constant 0 : index
      %c0_65 = arith.constant 0 : index
      %82 = vector.load %arg12[%c0_64, %c0_65] : memref<2x256xf32, #tpu.memory_space<vmem>>, vector<2x256xf32>
      tpu.vector_store %arg12[%c0_64, %c0_65], %81 {strides = array<i32>} : memref<2x256xf32, #tpu.memory_space<vmem>>, vector<2x256xf32>,
    } else {
    }
    %c0 = arith.constant 0 : index
    %c0_1 = arith.constant 0 : index
    %3 = vector.load %arg4[%c0, %c0_1] : memref<2x256xf32, #tpu.memory_space<vmem>>, vector<2x256xf32>
    %4 = arith.mulf %3, %3 : vector<2x256xf32>
    %c0_2 = arith.constant 0 : index
    %c0_3 = arith.constant 0 : index
    %5 = vector.load %arg6[%c0_2, %c0_3] : memref<2x256xf32, #tpu.memory_space<vmem>>, vector<2x256xf32>
    %cst = arith.constant 1.500000e+00 : f32
    %6 = vector.broadcast %cst : f32 to vector<2x256xf32>
    %7 = arith.mulf %6, %5 : vector<2x256xf32>
    %cst_4 = arith.constant 1.000000e+00 : f32
    %8 = vector.broadcast %cst_4 : f32 to vector<2x256xf32>
    %9 = arith.addf %8, %7 : vector<2x256xf32>
    %10 = vector.extract_strided_slice %9 {offsets = [0, 0], sizes = [1, 256], strides = [1, 1]} : vector<2x256xf32> to vector<1x256xf32>
    %11 = vector.extract_strided_slice %9 {offsets = [1, 0], sizes = [1, 256], strides = [1, 1]} : vector<2x256xf32> to vector<1x256xf32>
    %12 = arith.addf %10, %11 : vector<1x256xf32>
    %c0_5 = arith.constant 0 : index
    %c0_6 = arith.constant 0 : index
    %c0_7 = arith.constant 0 : index
    %13 = vector.load %arg2[%c0_5, %c0_6, %c0_7] : memref<2x12x256xf32, #tpu.memory_space<vmem>>, vector<2x4x256xf32>
    %c0_8 = arith.constant 0 : index
    %c0_9 = arith.constant 0 : index
    %c0_10 = arith.constant 0 : index
    %14 = vector.load %arg3[%c0_8, %c0_9, %c0_10] : memref<2x12x256xf32, #tpu.memory_space<vmem>>, vector<2x4x256xf32>
    %15 = arith.subf %13, %14 : vector<2x4x256xf32>
    %16 = arith.mulf %15, %15 : vector<2x4x256xf32>
    %17 = vector.extract_strided_slice %16 {offsets = [0, 0, 0], sizes = [2, 1, 256], strides = [1, 1, 1]} : vector<2x4x256xf32> to vector<2x1x256xf32>
    %18 = vector.shape_cast %17 : vector<2x1x256xf32> to vector<2x256xf32>
    %19 = arith.mulf %4, %18 : vector<2x256xf32>
    %20 = vector.extract_strided_slice %16 {offsets = [0, 3, 0], sizes = [2, 1, 256], strides = [1, 1, 1]} : vector<2x4x256xf32> to vector<2x1x256xf32>
    %21 = vector.shape_cast %20 : vector<2x1x256xf32> to vector<2x256xf32>
    %22 = arith.mulf %4, %21 : vector<2x256xf32>
    %23 = vector.extract_strided_slice %16 {offsets = [0, 1, 0], sizes = [2, 1, 256], strides = [1, 1, 1]} : vector<2x4x256xf32> to vector<2x1x256xf32>
    %24 = vector.shape_cast %23 : vector<2x1x256xf32> to vector<2x256xf32>
    %25 = vector.extract_strided_slice %16 {offsets = [0, 2, 0], sizes = [2, 1, 256], strides = [1, 1, 1]} : vector<2x4x256xf32> to vector<2x1x256xf32>
    %26 = vector.shape_cast %25 : vector<2x1x256xf32> to vector<2x256xf32>
    %27 = arith.addf %24, %26 : vector<2x256xf32>
    %28 = arith.mulf %3, %27 : vector<2x256xf32>
    %29 = vector.broadcast %12 : vector<1x256xf32> to vector<2x256xf32>
    %30 = arith.mulf %28, %29 : vector<2x256xf32>
    %c0_11 = arith.constant 0 : index
    %c11 = arith.constant 11 : index
    %c0_12 = arith.constant 0 : index
    %31 = vector.load %arg2[%c0_11, %c11, %c0_12] : memref<2x12x256xf32, #tpu.memory_space<vmem>>, vector<2x1x256xf32>
    %32 = vector.shape_cast %31 : vector<2x1x256xf32> to vector<2x256xf32>
    %c0_13 = arith.constant 0 : index
    %c11_14 = arith.constant 11 : index
    %c0_15 = arith.constant 0 : index
    %33 = vector.load %arg3[%c0_13, %c11_14, %c0_15] : memref<2x12x256xf32, #tpu.memory_space<vmem>>, vector<2x1x256xf32>
    %34 = vector.shape_cast %33 : vector<2x1x256xf32> to vector<2x256xf32>
    %35 = arith.subf %32, %34 : vector<2x256xf32>
    %36 = arith.mulf %35, %35 : vector<2x256xf32>
    %37 = arith.mulf %3, %36 : vector<2x256xf32>
    %38 = vector.broadcast %12 : vector<1x256xf32> to vector<2x256xf32>
    %39 = arith.mulf %37, %38 : vector<2x256xf32>
    %c0_16 = arith.constant 0 : index
    %c4 = arith.constant 4 : index
    %c0_17 = arith.constant 0 : index
    %40 = vector.load %arg2[%c0_16, %c4, %c0_17] : memref<2x12x256xf32, #tpu.memory_space<vmem>>, vector<2x6x256xf32>
    %c0_18 = arith.constant 0 : index
    %c4_19 = arith.constant 4 : index
    %c0_20 = arith.constant 0 : index
    %41 = vector.load %arg3[%c0_18, %c4_19, %c0_20] : memref<2x12x256xf32, #tpu.memory_space<vmem>>, vector<2x6x256xf32>
    %c0_21 = arith.constant 0 : index
    %c0_22 = arith.constant 0 : index
    %c0_23 = arith.constant 0 : index
    %42 = vector.load %arg5[%c0_21, %c0_22, %c0_23] : memref<2x6x256xf32, #tpu.memory_space<vmem>>, vector<2x6x256xf32>
    %cst_24 = arith.constant 1.000000e+00 : f32
    %43 = vector.broadcast %cst_24 : f32 to vector<2x6x256xf32>
    %44 = arith.subf %43, %40 : vector<2x6x256xf32>
    %45 = arith.mulf %44, %44 : vector<2x6x256xf32>
    %46 = arith.mulf %42, %45 : vector<2x6x256xf32>
    %cst_25 = arith.constant 1.000000e-07 : f32
    %47 = vector.broadcast %cst_25 : f32 to vector<2x6x256xf32>
    %48 = arith.addf %40, %47 : vector<2x6x256xf32>
    %49 = math.log %48 : vector<2x6x256xf32>
    %50 = arith.mulf %41, %49 : vector<2x6x256xf32>
    %51 = arith.mulf %46, %50 : vector<2x6x256xf32>
    %52 = vector.shape_cast %9 : vector<2x256xf32> to vector<2x1x256xf32>
    %53 = vector.broadcast %52 : vector<2x1x256xf32> to vector<2x6x256xf32>
    %54 = arith.mulf %51, %53 : vector<2x6x256xf32>
    %c0_26 = arith.constant 0 : index
    %c0_27 = arith.constant 0 : index
    %55 = vector.load %arg8[%c0_26, %c0_27] : memref<2x256xf32, #tpu.memory_space<vmem>>, vector<2x256xf32>
    %56 = arith.addf %55, %19 : vector<2x256xf32>
    %c0_28 = arith.constant 0 : index
    %c0_29 = arith.constant 0 : index
    %57 = vector.load %arg8[%c0_28, %c0_29] : memref<2x256xf32, #tpu.memory_space<vmem>>, vector<2x256xf32>
    tpu.vector_store %arg8[%c0_28, %c0_29], %56 {strides = array<i32>} : memref<2x256xf32, #tpu.memory_space<vmem>>, vector<2x256xf32>,
    %c0_30 = arith.constant 0 : index
    %c0_31 = arith.constant 0 : index
    %58 = vector.load %arg9[%c0_30, %c0_31] : memref<2x256xf32, #tpu.memory_space<vmem>>, vector<2x256xf32>
    %59 = arith.addf %58, %22 : vector<2x256xf32>
    %c0_32 = arith.constant 0 : index
    %c0_33 = arith.constant 0 : index
    %60 = vector.load %arg9[%c0_32, %c0_33] : memref<2x256xf32, #tpu.memory_space<vmem>>, vector<2x256xf32>
    tpu.vector_store %arg9[%c0_32, %c0_33], %59 {strides = array<i32>} : memref<2x256xf32, #tpu.memory_space<vmem>>, vector<2x256xf32>,
    %c0_34 = arith.constant 0 : index
    %c0_35 = arith.constant 0 : index
    %c0_36 = arith.constant 0 : index
    %61 = vector.load %arg10[%c0_34, %c0_35, %c0_36] : memref<2x6x256xf32, #tpu.memory_space<vmem>>, vector<2x6x256xf32>
    %62 = arith.addf %61, %54 : vector<2x6x256xf32>
    %c0_37 = arith.constant 0 : index
    %c0_38 = arith.constant 0 : index
    %c0_39 = arith.constant 0 : index
    %63 = vector.load %arg10[%c0_37, %c0_38, %c0_39] : memref<2x6x256xf32, #tpu.memory_space<vmem>>, vector<2x6x256xf32>
    tpu.vector_store %arg10[%c0_37, %c0_38, %c0_39], %62 {strides = array<i32>} : memref<2x6x256xf32, #tpu.memory_space<vmem>>, vector<2x6x256xf32>,
    %c0_40 = arith.constant 0 : index
    %c0_41 = arith.constant 0 : index
    %64 = vector.load %arg11[%c0_40, %c0_41] : memref<2x256xf32, #tpu.memory_space<vmem>>, vector<2x256xf32>
    %65 = arith.addf %64, %30 : vector<2x256xf32>
    %c0_42 = arith.constant 0 : index
    %c0_43 = arith.constant 0 : index
    %66 = vector.load %arg11[%c0_42, %c0_43] : memref<2x256xf32, #tpu.memory_space<vmem>>, vector<2x256xf32>
    tpu.vector_store %arg11[%c0_42, %c0_43], %65 {strides = array<i32>} : memref<2x256xf32, #tpu.memory_space<vmem>>, vector<2x256xf32>,
    %c0_44 = arith.constant 0 : index
    %c0_45 = arith.constant 0 : index
    %67 = vector.load %arg12[%c0_44, %c0_45] : memref<2x256xf32, #tpu.memory_space<vmem>>, vector<2x256xf32>
    %68 = arith.addf %67, %39 : vector<2x256xf32>
    %c0_46 = arith.constant 0 : index
    %c0_47 = arith.constant 0 : index
    %69 = vector.load %arg12[%c0_46, %c0_47] : memref<2x256xf32, #tpu.memory_space<vmem>>, vector<2x256xf32>
    tpu.vector_store %arg12[%c0_46, %c0_47], %68 {strides = array<i32>} : memref<2x256xf32, #tpu.memory_space<vmem>>, vector<2x256xf32>,
    %c0_i32_48 = arith.constant 0 : i32
    %70 = arith.cmpi eq, %arg1, %c0_i32_48 : i32
    %71 = arith.extui %70 : i1 to i32
    %c0_i32_49 = arith.constant 0 : i32
    %72 = arith.cmpi ne, %71, %c0_i32_49 : i32
    scf.if %72 {
      %c0_50 = arith.constant 0 : index
      %c0_51 = arith.constant 0 : index
      %73 = vector.load %arg8[%c0_50, %c0_51] : memref<2x256xf32, #tpu.memory_space<vmem>>, vector<2x256xf32>
      %74 = vector.shape_cast %73 : vector<2x256xf32> to vector<1x2x256xf32>
      %cst_52 = arith.constant dense<0.000000e+00> : vector<1xf32>
      %75 = vector.multi_reduction <add>, %74, %cst_52 [1, 2] : vector<1x2x256xf32> to vector<1xf32>
      %76 = vector.shape_cast %75 : vector<1xf32> to vector<1x1x1xf32>
      %77 = vector.extract %76[0, 0, 0] : f32 from vector<1x1x1xf32>
      %cst_53 = arith.constant 1.000000e-01 : f32
      %78 = arith.mulf %77, %cst_53 : f32
      %c0_54 = arith.constant 0 : index
      %c0_55 = arith.constant 0 : index
      %79 = vector.load %arg9[%c0_54, %c0_55] : memref<2x256xf32, #tpu.memory_space<vmem>>, vector<2x256xf32>
      %80 = vector.shape_cast %79 : vector<2x256xf32> to vector<1x2x256xf32>
      %cst_56 = arith.constant dense<0.000000e+00> : vector<1xf32>
      %81 = vector.multi_reduction <add>, %80, %cst_56 [1, 2] : vector<1x2x256xf32> to vector<1xf32>
      %82 = vector.shape_cast %81 : vector<1xf32> to vector<1x1x1xf32>
      %83 = vector.extract %82[0, 0, 0] : f32 from vector<1x1x1xf32>
      %cst_57 = arith.constant 1.000000e-01 : f32
      %84 = arith.mulf %83, %cst_57 : f32
      %c0_58 = arith.constant 0 : index
      %c0_59 = arith.constant 0 : index
      %c0_60 = arith.constant 0 : index
      %85 = vector.load %arg10[%c0_58, %c0_59, %c0_60] : memref<2x6x256xf32, #tpu.memory_space<vmem>>, vector<2x6x256xf32>
      %86 = vector.shape_cast %85 : vector<2x6x256xf32> to vector<1x2x6x256xf32>
      %cst_61 = arith.constant dense<0.000000e+00> : vector<1xf32>
      %87 = vector.multi_reduction <add>, %86, %cst_61 [1, 2, 3] : vector<1x2x6x256xf32> to vector<1xf32>
      %88 = vector.shape_cast %87 : vector<1xf32> to vector<1x1x1x1xf32>
      %89 = vector.extract %88[0, 0, 0, 0] : f32 from vector<1x1x1x1xf32>
      %cst_62 = arith.constant 0.000000e+00 : f32
      %90 = arith.subf %cst_62, %89 : f32
      %cst_63 = arith.constant 0.00999999977 : f32
      %91 = arith.mulf %90, %cst_63 : f32
      %c0_64 = arith.constant 0 : index
      %c0_65 = arith.constant 0 : index
      %92 = vector.load %arg11[%c0_64, %c0_65] : memref<2x256xf32, #tpu.memory_space<vmem>>, vector<2x256xf32>
      %93 = vector.shape_cast %92 : vector<2x256xf32> to vector<1x2x256xf32>
      %cst_66 = arith.constant dense<0.000000e+00> : vector<1xf32>
      %94 = vector.multi_reduction <add>, %93, %cst_66 [1, 2] : vector<1x2x256xf32> to vector<1xf32>
      %95 = vector.shape_cast %94 : vector<1xf32> to vector<1x1x1xf32>
      %96 = vector.extract %95[0, 0, 0] : f32 from vector<1x1x1xf32>
      %cst_67 = arith.constant 5.000000e-05 : f32
      %97 = arith.mulf %96, %cst_67 : f32
      %c0_68 = arith.constant 0 : index
      %c0_69 = arith.constant 0 : index
      %98 = vector.load %arg12[%c0_68, %c0_69] : memref<2x256xf32, #tpu.memory_space<vmem>>, vector<2x256xf32>
      %99 = vector.shape_cast %98 : vector<2x256xf32> to vector<1x2x256xf32>
      %cst_70 = arith.constant dense<0.000000e+00> : vector<1xf32>
      %100 = vector.multi_reduction <add>, %99, %cst_70 [1, 2] : vector<1x2x256xf32> to vector<1xf32>
      %101 = vector.shape_cast %100 : vector<1xf32> to vector<1x1x1xf32>
      %102 = vector.extract %101[0, 0, 0] : f32 from vector<1x1x1xf32>
      %cst_71 = arith.constant 7.500000e-05 : f32
      %103 = arith.mulf %102, %cst_71 : f32
      %104 = vector.broadcast %78 : f32 to vector<1x128xf32>
      %105 = vector.broadcast %84 : f32 to vector<1x128xf32>
      %106 = vector.broadcast %91 : f32 to vector<1x128xf32>
      %107 = vector.broadcast %97 : f32 to vector<1x128xf32>
      %108 = vector.broadcast %103 : f32 to vector<1x128xf32>
      %cst_72 = arith.constant 0.000000e+00 : f32
      %109 = vector.broadcast %cst_72 : f32 to vector<3x128xf32>
      %110 = tpu.concatenate %104, %105, %106, %107, %108, %109 in 0 : vector<1x128xf32>, vector<1x128xf32>, vector<1x128xf32>, vector<1x128xf32>, vector<1x128xf32>, vector<3x128xf32> -> vector<8x128xf32>
      %c0_73 = arith.constant 0 : index
      %c0_74 = arith.constant 0 : index
      %c0_75 = arith.constant 0 : index
      %111 = vector.load %arg7[%c0_73, %c0_74, %c0_75] : memref<1x8x128xf32, #tpu.memory_space<vmem>>, vector<1x8x128xf32>
      %112 = vector.shape_cast %111 : vector<1x8x128xf32> to vector<8x128xf32>
      %113 = vector.shape_cast %110 : vector<8x128xf32> to vector<1x8x128xf32>
      tpu.vector_store %arg7[%c0_73, %c0_74, %c0_75], %113 {strides = array<i32>} : memref<1x8x128xf32, #tpu.memory_space<vmem>>, vector<1x8x128xf32>,
    } else {
    }
    return
  }
  func.func @transform_0(%arg0: i32, %arg1: i32) -> (i32, i32, i32) {
    %c1_i32 = arith.constant 1 : i32
    %0 = arith.muli %arg0, %c1_i32 : i32
    %1 = arith.addi %0, %arg1 : i32
    %c0_i32 = arith.constant 0 : i32
    %2 = arith.minsi %1, %c0_i32 : i32
    %c0_i32_0 = arith.constant 0 : i32
    %c0_i32_1 = arith.constant 0 : i32
    %c0_i32_2 = arith.constant 0 : i32
    return %c0_i32_0, %c0_i32_1, %2 : i32, i32, i32
  }
  func.func @transform_1(%arg0: i32, %arg1: i32) -> (i32, i32, i32) {
    %c1_i32 = arith.constant 1 : i32
    %0 = arith.muli %arg0, %c1_i32 : i32
    %1 = arith.addi %0, %arg1 : i32
    %c0_i32 = arith.constant 0 : i32
    %2 = arith.minsi %1, %c0_i32 : i32
    %c0_i32_0 = arith.constant 0 : i32
    %c0_i32_1 = arith.constant 0 : i32
    %c0_i32_2 = arith.constant 0 : i32
    return %c0_i32_0, %c0_i32_1, %2 : i32, i32, i32
  }
  func.func @transform_2(%arg0: i32, %arg1: i32) -> (i32, i32) {
    %c1_i32 = arith.constant 1 : i32
    %0 = arith.muli %arg0, %c1_i32 : i32
    %1 = arith.addi %0, %arg1 : i32
    %c0_i32 = arith.constant 0 : i32
    %2 = arith.minsi %1, %c0_i32 : i32
    %c0_i32_0 = arith.constant 0 : i32
    %c0_i32_1 = arith.constant 0 : i32
    return %c0_i32_0, %2 : i32, i32
  }
  func.func @transform_3(%arg0: i32, %arg1: i32) -> (i32, i32, i32) {
    %c1_i32 = arith.constant 1 : i32
    %0 = arith.muli %arg0, %c1_i32 : i32
    %1 = arith.addi %0, %arg1 : i32
    %c0_i32 = arith.constant 0 : i32
    %2 = arith.minsi %1, %c0_i32 : i32
    %c0_i32_0 = arith.constant 0 : i32
    %c0_i32_1 = arith.constant 0 : i32
    %c0_i32_2 = arith.constant 0 : i32
    return %c0_i32_0, %c0_i32_1, %2 : i32, i32, i32
  }
  func.func @transform_4(%arg0: i32, %arg1: i32) -> (i32, i32) {
    %c1_i32 = arith.constant 1 : i32
    %0 = arith.muli %arg0, %c1_i32 : i32
    %1 = arith.addi %0, %arg1 : i32
    %c0_i32 = arith.constant 0 : i32
    %2 = arith.minsi %1, %c0_i32 : i32
    %c0_i32_0 = arith.constant 0 : i32
    %c0_i32_1 = arith.constant 0 : i32
    return %c0_i32_0, %2 : i32, i32
  }
  func.func @transform_5(%arg0: i32, %arg1: i32) -> (i32, i32, i32) {
    %c0_i32 = arith.constant 0 : i32
    %c0_i32_0 = arith.constant 0 : i32
    %c0_i32_1 = arith.constant 0 : i32
    return %arg0, %c0_i32, %c0_i32_0 : i32, i32, i32
  }
}

</mosaic_0001>

<llo_original>
// kernel: bcnn_loss.1
$region0: #{bcnn_loss.1}
  #allocation0 [shape = 'u32[]', space=smem, size = 0x4, offset = 0x4, fixed_abs, tag = 'smem constant byte address 0x4 - core index']
  #allocation1 [shape = 'u32[144,128]{1,0:T(1,128)}', space=vmem, size = 0x12000, scoped, tag = 'internal scratch']
  #allocation2 [shape = 'f32[2,256]{1,0:T(2,128)}', space=vmem, size = 0x800, scoped, tag = 'scratch operand']
  #allocation3 [shape = 'f32[2,256]{1,0:T(2,128)}', space=vmem, size = 0x800, scoped, tag = 'scratch operand']
  #allocation4 [shape = 'f32[2,6,256]{2,1,0:T(8,128)}', space=vmem, size = 0x4000, scoped, tag = 'scratch operand']
  #allocation5 [shape = 'f32[2,256]{1,0:T(2,128)}', space=vmem, size = 0x800, scoped, tag = 'scratch operand']
  #allocation6 [shape = 'f32[2,256]{1,0:T(2,128)}', space=vmem, size = 0x800, scoped, tag = 'scratch operand']
  %s0 = inlined_call_operand.vmem [shape: f32[2,12,256], index: 0, kind: input, shape index: {}]
  %s1 = inlined_call_operand.vmem [shape: f32[2,12,256], index: 1, kind: input, shape index: {}]
  %s2 = inlined_call_operand.vmem [shape: f32[2,256], index: 2, kind: input, shape index: {}]
  %s3 = inlined_call_operand.vmem [shape: f32[2,6,256], index: 3, kind: input, shape index: {}]
  %s4 = inlined_call_operand.vmem [shape: f32[2,256], index: 4, kind: input, shape index: {}]
  %s5 = inlined_call_operand.vmem [shape: f32[1,8,128], index: 5, kind: output, shape index: {}]
  %s6 = sld [smem:[#allocation0]]
  $region38: #{bcnn_loss.1} parent=0
    _
  %s8 = ssub.s32 1, %s6
  %s9 = scalar_select 0, %s8, %s6
  // Predicated region
  $region2: #{bcnn_loss.1} parent=0 // pred_check
    _
  $region3: #{bcnn_loss.1} parent=0 // pred_check_branch
    %11 = sbr.rel (0) target = $region5
  $region4: #{bcnn_loss.1} parent=0 // pred_region
    %s12 = sadd.s32 0, 0
    %p13 = scmp.lt.s32.totalorder %s12, 0
    %s14 = scalar_select %p13, %s12, 0
    %s15 = smul.u32 2, %s14
    %p16 = scmp.lt.s32.totalorder %s15, 1
    %s17 = scalar_select %p16, %s15, 1
    %s18 = smul.addr %s17, 8
    %s19 = scalar_lea.vmem %s0, %s18
    %s20 = sadd.s32 0, 0
    %p21 = scmp.lt.s32.totalorder %s20, 0
    %s22 = scalar_select %p21, %s20, 0
    %s23 = smul.u32 2, %s22
  $region5: #{bcnn_loss.1} parent=0 // pred_fallthru
    _
  // Predicated region
  $region6: #{bcnn_loss.1} parent=0 // pred_check
    _
  $region7: #{bcnn_loss.1} parent=0 // pred_check_branch
    %25 = sbr.rel (0) target = $region9
  $region8: #{bcnn_loss.1} parent=0 // pred_region
    %s26 = sadd.s32 0, 0
    %p27 = scmp.lt.s32.totalorder %s26, 0
    %s28 = scalar_select %p27, %s26, 0
    %s29 = smul.u32 2, %s28
    %p30 = scmp.lt.s32.totalorder %s29, 1
    %s31 = scalar_select %p30, %s29, 1
    %s32 = smul.addr %s31, 8
    %s33 = scalar_lea.vmem %s1, %s32
    %s34 = sadd.s32 0, 0
    %p35 = scmp.lt.s32.totalorder %s34, 0
    %s36 = scalar_select %p35, %s34, 0
    %s37 = smul.u32 2, %s36
  $region9: #{bcnn_loss.1} parent=0 // pred_fallthru
    _
  // Predicated region
  $region10: #{bcnn_loss.1} parent=0 // pred_check
    _
  $region11: #{bcnn_loss.1} parent=0 // pred_check_branch
    %39 = sbr.rel (0) target = $region13
  $region12: #{bcnn_loss.1} parent=0 // pred_region
    %s40 = sadd.s32 0, 0
    %p41 = scmp.lt.s32.totalorder %s40, 0
    %s42 = scalar_select %p41, %s40, 0
    %s43 = smul.u32 2, %s42
    %p44 = scmp.lt.s32.totalorder %s43, 1
    %s45 = scalar_select %p44, %s43, 1
    %s46 = smul.addr %s45, 2
    %s47 = scalar_lea.vmem %s2, %s46
    %s48 = sadd.s32 0, 0
    %p49 = scmp.lt.s32.totalorder %s48, 0
    %s50 = scalar_select %p49, %s48, 0
    %s51 = smul.u32 2, %s50
  $region13: #{bcnn_loss.1} parent=0 // pred_fallthru
    _
  // Predicated region
  $region14: #{bcnn_loss.1} parent=0 // pred_check
    _
  $region15: #{bcnn_loss.1} parent=0 // pred_check_branch
    %53 = sbr.rel (0) target = $region17
  $region16: #{bcnn_loss.1} parent=0 // pred_region
    %s54 = sadd.s32 0, 0
    %p55 = scmp.lt.s32.totalorder %s54, 0
    %s56 = scalar_select %p55, %s54, 0
    %s57 = smul.u32 2, %s56
    %p58 = scmp.lt.s32.totalorder %s57, 1
    %s59 = scalar_select %p58, %s57, 1
    %s60 = smul.addr %s59, 8
    %s61 = scalar_lea.vmem %s3, %s60
    %s62 = sadd.s32 0, 0
    %p63 = scmp.lt.s32.totalorder %s62, 0
    %s64 = scalar_select %p63, %s62, 0
    %s65 = smul.u32 2, %s64
  $region17: #{bcnn_loss.1} parent=0 // pred_fallthru
    _
  // Predicated region
  $region18: #{bcnn_loss.1} parent=0 // pred_check
    _
  $region19: #{bcnn_loss.1} parent=0 // pred_check_branch
    %67 = sbr.rel (0) target = $region21
  $region20: #{bcnn_loss.1} parent=0 // pred_region
    %s68 = sadd.s32 0, 0
    %p69 = scmp.lt.s32.totalorder %s68, 0
    %s70 = scalar_select %p69, %s68, 0
    %s71 = smul.u32 2, %s70
    %p72 = scmp.lt.s32.totalorder %s71, 1
    %s73 = scalar_select %p72, %s71, 1
    %s74 = smul.addr %s73, 2
    %s75 = scalar_lea.vmem %s4, %s74
    %s76 = sadd.s32 0, 0
    %p77 = scmp.lt.s32.totalorder %s76, 0
    %s78 = scalar_select %p77, %s76, 0
    %s79 = smul.u32 2, %s78
  $region21: #{bcnn_loss.1} parent=0 // pred_fallthru
    _
  %s80 = sadd.s32 0, 0
  %p81 = scmp.lt.s32.totalorder %s80, 0
  %s82 = scalar_select %p81, %s80, 0
  %s83 = smul.u32 2, %s82
  %p84 = scmp.lt.s32.totalorder %s83, 1
  %s85 = scalar_select %p84, %s83, 1
  %s86 = smul.addr %s85, 8
  %s87 = scalar_lea.vmem %s0, %s86
  %s88 = sadd.s32 0, 0
  %p89 = scmp.lt.s32.totalorder %s88, 0
  %s90 = scalar_select %p89, %s88, 0
  %s91 = smul.u32 2, %s90
  %p92 = scmp.lt.s32.totalorder %s91, 1
  %s93 = scalar_select %p92, %s91, 1
  %s94 = smul.addr %s93, 8
  %s95 = scalar_lea.vmem %s1, %s94
  %s96 = sadd.s32 0, 0
  %p97 = scmp.lt.s32.totalorder %s96, 0
  %s98 = scalar_select %p97, %s96, 0
  %s99 = smul.u32 2, %s98
  %p100 = scmp.lt.s32.totalorder %s99, 1
  %s101 = scalar_select %p100, %s99, 1
  %s102 = smul.addr %s101, 2
  %s103 = scalar_lea.vmem %s2, %s102
  %s104 = sadd.s32 0, 0
  %p105 = scmp.lt.s32.totalorder %s104, 0
  %s106 = scalar_select %p105, %s104, 0
  %s107 = smul.u32 2, %s106
  %p108 = scmp.lt.s32.totalorder %s107, 1
  %s109 = scalar_select %p108, %s107, 1
  %s110 = smul.addr %s109, 8
  %s111 = scalar_lea.vmem %s3, %s110
  %s112 = sadd.s32 0, 0
  %p113 = scmp.lt.s32.totalorder %s112, 0
  %s114 = scalar_select %p113, %s112, 0
  %s115 = smul.u32 2, %s114
  %p116 = scmp.lt.s32.totalorder %s115, 1
  %s117 = scalar_select %p116, %s115, 1
  %s118 = smul.addr %s117, 2
  %s119 = scalar_lea.vmem %s4, %s118
  %s120 = sadd.s32 0, 0
  %p121 = scmp.lt.s32.totalorder %s120, 0
  %s122 = scalar_select %p121, %s120, 0
  %s123 = smul.u32 2, %s122
  %p124 = scmp.lt.s32.totalorder %s123, 1
  %s125 = scalar_select %p124, %s123, 1
  %s126 = smul.addr %s125, 8
  %s127 = scalar_lea.vmem %s0, %s126
  %s128 = sadd.s32 0, 0
  %p129 = scmp.lt.s32.totalorder %s128, 0
  %s130 = scalar_select %p129, %s128, 0
  %s131 = smul.u32 2, %s130
  %s132 = sadd.s32 0, 0
  %p133 = scmp.lt.s32.totalorder %s132, 0
  %s134 = scalar_select %p133, %s132, 0
  %s135 = smul.u32 2, %s134
  %p136 = scmp.lt.s32.totalorder %s135, 1
  %s137 = scalar_select %p136, %s135, 1
  %s138 = smul.addr %s137, 8
  %s139 = scalar_lea.vmem %s1, %s138
  %s140 = sadd.s32 0, 0
  %p141 = scmp.lt.s32.totalorder %s140, 0
  %s142 = scalar_select %p141, %s140, 0
  %s143 = smul.u32 2, %s142
  %s144 = sadd.s32 0, 0
  %p145 = scmp.lt.s32.totalorder %s144, 0
  %s146 = scalar_select %p145, %s144, 0
  %s147 = smul.u32 2, %s146
  %p148 = scmp.lt.s32.totalorder %s147, 1
  %s149 = scalar_select %p148, %s147, 1
  %s150 = smul.addr %s149, 2
  %s151 = scalar_lea.vmem %s2, %s150
  %s152 = sadd.s32 0, 0
  %p153 = scmp.lt.s32.totalorder %s152, 0
  %s154 = scalar_select %p153, %s152, 0
  %s155 = smul.u32 2, %s154
  %s156 = sadd.s32 0, 0
  %p157 = scmp.lt.s32.totalorder %s156, 0
  %s158 = scalar_select %p157, %s156, 0
  %s159 = smul.u32 2, %s158
  %p160 = scmp.lt.s32.totalorder %s159, 1
  %s161 = scalar_select %p160, %s159, 1
  %s162 = smul.addr %s161, 8
  %s163 = scalar_lea.vmem %s3, %s162
  %s164 = sadd.s32 0, 0
  %p165 = scmp.lt.s32.totalorder %s164, 0
  %s166 = scalar_select %p165, %s164, 0
  %s167 = smul.u32 2, %s166
  %s168 = sadd.s32 0, 0
  %p169 = scmp.lt.s32.totalorder %s168, 0
  %s170 = scalar_select %p169, %s168, 0
  %s171 = smul.u32 2, %s170
  %p172 = scmp.lt.s32.totalorder %s171, 1
  %s173 = scalar_select %p172, %s171, 1
  %s174 = smul.addr %s173, 2
  %s175 = scalar_lea.vmem %s4, %s174
  %s176 = sadd.s32 0, 0
  %p177 = scmp.lt.s32.totalorder %s176, 0
  %s178 = scalar_select %p177, %s176, 0
  %s179 = smul.u32 2, %s178
  %p180 = scmp.eq.s32.totalorder 0, 0
  // Predicated region
  $region22: #{bcnn_loss.1} parent=0 // pred_check
    %p181 = pneg %p180
  $region23: #{bcnn_loss.1} parent=0 // pred_check_branch
    %183 = sbr.rel (%p181) target = $region25
  $region24: #{bcnn_loss.1} parent=0 // pred_region
    %184 = vst [vmem:[#allocation2] sm:$0xf] 0.0
    %185 = vst [vmem:[#allocation3] sm:$0xf] 0.0
    %186 = vst [vmem:[#allocation4] sm:$0x3f] 0.0
    %187 = vst [vmem:[#allocation4 + $0x8] sm:$0x3f] 0.0
    %188 = vst [vmem:[#allocation4 + $0x10] sm:$0x3f] 0.0
    %189 = vst [vmem:[#allocation4 + $0x18] sm:$0x3f] 0.0
    %190 = vst [vmem:[#allocation5] sm:$0xf] 0.0
    %191 = vst [vmem:[#allocation6] sm:$0xf] 0.0
  $region25: #{bcnn_loss.1} parent=0 // pred_fallthru
    _
  %v192 = vld [vmem:[%s151] sm:$0xf]
  %v193 = vmul.f32 %v192, %v192
  %v194 = vld [vmem:[%s175] sm:$0xf]
  %v195 = vmul.f32 %v194, 1.5
  %v196 = vadd.f32 %v195, 1.0
  %v198 = vrot.slane %v196, 7
  %v199 = vrot.slane %v198, 2
  %v201 = vadd.f32 %v196, %v199
  %v202 = vld [vmem:[%s127] sm:$0xf]
  %v203 = vld [vmem:[%s127 + $0x8] sm:$0xf]
  %v204 = vld [vmem:[%s127 + $0x20] sm:$0xf]
  %v205 = vld [vmem:[%s127 + $0x28] sm:$0xf]
  %v206 = vld [vmem:[%s139] sm:$0xf]
  %v207 = vld [vmem:[%s139 + $0x8] sm:$0xf]
  %v208 = vld [vmem:[%s139 + $0x20] sm:$0xf]
  %v209 = vld [vmem:[%s139 + $0x28] sm:$0xf]
  %v210 = vsub.f32 %v202, %v206
  %v211 = vsub.f32 %v203, %v207
  %v212 = vsub.f32 %v204, %v208
  %v213 = vsub.f32 %v205, %v209
  %v214 = vmul.f32 %v210, %v210
  %v215 = vmul.f32 %v211, %v211
  %v216 = vmul.f32 %v212, %v212
  %v217 = vmul.f32 %v213, %v213
  %v222 = vcombine.low %v214, %v215
  %v224 = vunpack.c.l.s4 1983009808
  %v225 = vunpack.c.0.s8 %v224
  %v226 = vlaneseq
  %v227 = vshrl.u32 %v226, 7
  %v228 = vsub.s32 %v225, %v227
  %v229 = vrot.slane %v222, %v228
  %v230 = vcombine.low %v216, %v217
  %v232 = vunpack.c.l.s4 1983009808
  %v233 = vunpack.c.0.s8 %v232
  %v234 = vlaneseq
  %v235 = vshrl.u32 %v234, 7
  %v236 = vsub.s32 %v233, %v235
  %v237 = vrot.slane %v230, %v236
  %vm238 = vcmask 1044484
  %v239 = vsel %vm238, %v229, %v229
  %vm240 = vcmask 1046534
  %v241 = vsel %vm240, %v229, %v239
  %v242 = vrot.slane %v237, 7
  %vm243 = vcmask 1041409
  %v244 = vsel %vm243, %v242, %v241
  %vm245 = vcmask 1043459
  %v246 = vsel %vm245, %v242, %v244
  %vm247 = vcmask 1045509
  %v248 = vsel %vm247, %v242, %v246
  %vm249 = vcmask 1047559
  %v250 = vsel %vm249, %v242, %v248
  %v252 = vmul.f32 %v193, %v250
  %v253 = vcombine.high %v229, %v229
  %v254 = vcombine.high %v237, %v237
  %v255 = vrot.slane %v253, 1
  %v256 = vsel %vm238, %v255, %v255
  %v257 = vsel %vm240, %v255, %v256
  %v258 = vsel %vm243, %v254, %v257
  %v259 = vsel %vm245, %v254, %v258
  %v260 = vsel %vm247, %v254, %v259
  %v261 = vsel %vm249, %v254, %v260
  %v263 = vmul.f32 %v193, %v261
  %v264 = vrot.slane %v214, 1
  %v265 = vrot.slane %v215, 1
  %v266 = vrot.slane %v216, 1
  %v267 = vrot.slane %v217, 1
  %v272 = vadd.f32 %v214, %v264
  %v273 = vadd.f32 %v215, %v265
  %v274 = vadd.f32 %v216, %v266
  %v275 = vadd.f32 %v217, %v267
  %v280 = vcombine.low %v272, %v273
  %v282 = vunpack.c.l.s4 1983009808
  %v283 = vunpack.c.0.s8 %v282
  %v284 = vlaneseq
  %v285 = vshrl.u32 %v284, 7
  %v286 = vsub.s32 %v283, %v285
  %v287 = vrot.slane %v280, %v286
  %v288 = vcombine.low %v274, %v275
  %v290 = vunpack.c.l.s4 1983009808
  %v291 = vunpack.c.0.s8 %v290
  %v292 = vlaneseq
  %v293 = vshrl.u32 %v292, 7
  %v294 = vsub.s32 %v291, %v293
  %v295 = vrot.slane %v288, %v294
  %v296 = vrot.slane %v287, 1
  %v297 = vsel %vm238, %v296, %v296
  %v298 = vsel %vm240, %v296, %v297
  %v299 = vsel %vm243, %v295, %v298
  %v300 = vsel %vm245, %v295, %v299
  %v301 = vsel %vm247, %v295, %v300
  %v302 = vsel %vm249, %v295, %v301
  %v304 = vmul.f32 %v192, %v302
  %v306 = vlaneseq
  %v307 = vshrl.u32 %v306, 7
  %v308 = vsub.s32 0, %v307
  %v309 = vrot.slane %v201, %v308
  %v310 = vlaneseq
  %v311 = vshrl.u32 %v310, 7
  %v312 = vsub.s32 2, %v311
  %v313 = vrot.slane %v201, %v312
  %v316 = vlaneseq
  %v317 = vshrl.u32 %v316, 7
  %v318 = vsub.s32 0, %v317
  %v319 = vrot.slane %v309, %v318
  %v320 = vlaneseq
  %v321 = vshrl.u32 %v320, 7
  %v322 = vsub.s32 0, %v321
  %v323 = vrot.slane %v313, %v322
  %v326 = vcombine.low %v319, %v323
  %v328 = vunpack.c.l.s4 1983009808
  %v329 = vunpack.c.0.s8 %v328
  %v330 = vlaneseq
  %v331 = vshrl.u32 %v330, 7
  %v332 = vsub.s32 %v329, %v331
  %v333 = vrot.slane %v326, %v332
  %v335 = vmul.f32 %v304, %v333
  %s336 = scalar_lea.vmem %s127, 19
  %v337 = vld [vmem:[%s336] ss:$8 sm:$0x3]
  %s338 = scalar_lea.vmem %s127, 51
  %v339 = vld [vmem:[%s338] ss:$8 sm:$0x3]
  %s340 = scalar_lea.vmem %s139, 19
  %v341 = vld [vmem:[%s340] ss:$8 sm:$0x3]
  %s342 = scalar_lea.vmem %s139, 51
  %v343 = vld [vmem:[%s342] ss:$8 sm:$0x3]
  %v344 = vsub.f32 %v337, %v341
  %v345 = vsub.f32 %v339, %v343
  %v346 = vmul.f32 %v344, %v344
  %v347 = vmul.f32 %v345, %v345
  %v350 = vcombine.low %v346, %v347
  %v352 = vunpack.c.l.s4 1935823168
  %v353 = vunpack.c.0.s8 %v352
  %v354 = vlaneseq
  %v355 = vshrl.u32 %v354, 7
  %v356 = vsub.s32 %v353, %v355
  %v357 = vrot.slane %v350, %v356
  %v359 = vmul.f32 %v192, %v357
  %v360 = vmul.f32 %v359, %v333
  %v361 = vld [vmem:[%s127] sm:$0xf0]
  %v362 = vld [vmem:[%s127 + $0x8] sm:$0xf0]
  %v363 = vld [vmem:[%s127 + $0x10] sm:$0x3]
  %v364 = vld [vmem:[%s127 + $0x18] sm:$0x3]
  %v365 = vld [vmem:[%s127 + $0x20] sm:$0xf0]
  %v366 = vld [vmem:[%s127 + $0x28] sm:$0xf0]
  %v367 = vld [vmem:[%s127 + $0x30] sm:$0x3]
  %v368 = vld [vmem:[%s127 + $0x38] sm:$0x3]
  %v369 = vld [vmem:[%s139] sm:$0xf0]
  %v370 = vld [vmem:[%s139 + $0x8] sm:$0xf0]
  %v371 = vld [vmem:[%s139 + $0x10] sm:$0x3]
  %v372 = vld [vmem:[%s139 + $0x18] sm:$0x3]
  %v373 = vld [vmem:[%s139 + $0x20] sm:$0xf0]
  %v374 = vld [vmem:[%s139 + $0x28] sm:$0xf0]
  %v375 = vld [vmem:[%s139 + $0x30] sm:$0x3]
  %v376 = vld [vmem:[%s139 + $0x38] sm:$0x3]
  %v377 = vld [vmem:[%s163] sm:$0x3f]
  %v378 = vld [vmem:[%s163 + $0x8] sm:$0x3f]
  %v379 = vld [vmem:[%s163 + $0x10] sm:$0x3f]
  %v380 = vld [vmem:[%s163 + $0x18] sm:$0x3f]
  %v381 = vsub.f32 1.0, %v361
  %v382 = vsub.f32 1.0, %v362
  %v383 = vsub.f32 1.0, %v363
  %v384 = vsub.f32 1.0, %v364
  %v385 = vsub.f32 1.0, %v365
  %v386 = vsub.f32 1.0, %v366
  %v387 = vsub.f32 1.0, %v367
  %v388 = vsub.f32 1.0, %v368
  %v389 = vmul.f32 %v381, %v381
  %v390 = vmul.f32 %v382, %v382
  %v391 = vmul.f32 %v383, %v383
  %v392 = vmul.f32 %v384, %v384
  %v393 = vmul.f32 %v385, %v385
  %v394 = vmul.f32 %v386, %v386
  %v395 = vmul.f32 %v387, %v387
  %v396 = vmul.f32 %v388, %v388
  %vm405 = vcmask 1043456
  %v406 = vrot.slane %v389, 4
  %v407 = vrot.slane %v391, 4
  %v408 = vsel %vm405, %v406, %v407
  %v409 = vrot.slane %v390, 4
  %v410 = vrot.slane %v392, 4
  %v411 = vsel %vm405, %v409, %v410
  %v412 = vrot.slane %v393, 4
  %v413 = vrot.slane %v395, 4
  %v414 = vsel %vm405, %v412, %v413
  %v415 = vrot.slane %v394, 4
  %v416 = vrot.slane %v396, 4
  %v417 = vsel %vm405, %v415, %v416
  %v422 = vmul.f32 %v377, %v408
  %v423 = vmul.f32 %v378, %v411
  %v424 = vmul.f32 %v379, %v414
  %v425 = vmul.f32 %v380, %v417
  %v426 = vadd.f32 %v361, 1e-07
  %v427 = vadd.f32 %v362, 1e-07
  %v428 = vadd.f32 %v363, 1e-07
  %v429 = vadd.f32 %v364, 1e-07
  %v430 = vadd.f32 %v365, 1e-07
  %v431 = vadd.f32 %v366, 1e-07
  %v432 = vadd.f32 %v367, 1e-07
  %v433 = vadd.f32 %v368, 1e-07
  %v434 = vlog2.pop %v426
  %v435 = vmul.f32 %v434, 0.6931472
  %v436 = vlog2.pop %v427
  %v437 = vmul.f32 %v436, 0.6931472
  %v438 = vlog2.pop %v428
  %v439 = vmul.f32 %v438, 0.6931472
  %v440 = vlog2.pop %v429
  %v441 = vmul.f32 %v440, 0.6931472
  %v442 = vlog2.pop %v430
  %v443 = vmul.f32 %v442, 0.6931472
  %v444 = vlog2.pop %v431
  %v445 = vmul.f32 %v444, 0.6931472
  %v446 = vlog2.pop %v432
  %v447 = vmul.f32 %v446, 0.6931472
  %v448 = vlog2.pop %v433
  %v449 = vmul.f32 %v448, 0.6931472
  %v450 = vmul.f32 %v369, %v435
  %v451 = vmul.f32 %v370, %v437
  %v452 = vmul.f32 %v371, %v439
  %v453 = vmul.f32 %v372, %v441
  %v454 = vmul.f32 %v373, %v443
  %v455 = vmul.f32 %v374, %v445
  %v456 = vmul.f32 %v375, %v447
  %v457 = vmul.f32 %v376, %v449
  %v466 = vrot.slane %v450, 4
  %v467 = vrot.slane %v452, 4
  %v468 = vsel %vm405, %v466, %v467
  %v469 = vrot.slane %v451, 4
  %v470 = vrot.slane %v453, 4
  %v471 = vsel %vm405, %v469, %v470
  %v472 = vrot.slane %v454, 4
  %v473 = vrot.slane %v456, 4
  %v474 = vsel %vm405, %v472, %v473
  %v475 = vrot.slane %v455, 4
  %v476 = vrot.slane %v457, 4
  %v477 = vsel %vm405, %v475, %v476
  %v482 = vmul.f32 %v422, %v468
  %v483 = vmul.f32 %v423, %v471
  %v484 = vmul.f32 %v424, %v474
  %v485 = vmul.f32 %v425, %v477
  %v487 = vunpack.c.l.s4 1966171168
  %v488 = vunpack.c.0.s8 %v487
  %v489 = vlaneseq
  %v490 = vshrl.u32 %v489, 7
  %v491 = vsub.s32 %v488, %v490
  %v492 = vrot.slane %v196, %v491
  %v493 = vcombine.high %v492, %v492
  %v494 = vlaneseq
  %v495 = vshrl.u32 %v494, 7
  %v496 = vsub.s32 0, %v495
  %v497 = vrot.slane %v492, %v496
  %v498 = vlaneseq
  %v499 = vshrl.u32 %v498, 7
  %v500 = vsub.s32 1, %v499
  %v501 = vrot.slane %v492, %v500
  %v502 = vlaneseq
  %v503 = vshrl.u32 %v502, 7
  %v504 = vsub.s32 0, %v503
  %v505 = vrot.slane %v493, %v504
  %v506 = vlaneseq
  %v507 = vshrl.u32 %v506, 7
  %v508 = vsub.s32 1, %v507
  %v509 = vrot.slane %v493, %v508
  %v514 = vmul.f32 %v482, %v497
  %v515 = vmul.f32 %v483, %v501
  %v516 = vmul.f32 %v484, %v505
  %v517 = vmul.f32 %v485, %v509
  %v518 = vld [vmem:[#allocation2] sm:$0xf]
  %v519 = vadd.f32 %v518, %v252
  %520 = vst [vmem:[#allocation2] sm:$0xf] %v519
  %v521 = vld [vmem:[#allocation3] sm:$0xf]
  %v522 = vadd.f32 %v521, %v263
  %523 = vst [vmem:[#allocation3] sm:$0xf] %v522
  %v524 = vld [vmem:[#allocation4] sm:$0x3f]
  %v525 = vld [vmem:[#allocation4 + $0x8] sm:$0x3f]
  %v526 = vld [vmem:[#allocation4 + $0x10] sm:$0x3f]
  %v527 = vld [vmem:[#allocation4 + $0x18] sm:$0x3f]
  %v528 = vadd.f32 %v524, %v514
  %v529 = vadd.f32 %v525, %v515
  %v530 = vadd.f32 %v526, %v516
  %v531 = vadd.f32 %v527, %v517
  %532 = vst [vmem:[#allocation4] sm:$0x3f] %v528
  %533 = vst [vmem:[#allocation4 + $0x8] sm:$0x3f] %v529
  %534 = vst [vmem:[#allocation4 + $0x10] sm:$0x3f] %v530
  %535 = vst [vmem:[#allocation4 + $0x18] sm:$0x3f] %v531
  %v536 = vld [vmem:[#allocation5] sm:$0xf]
  %v537 = vadd.f32 %v536, %v335
  %538 = vst [vmem:[#allocation5] sm:$0xf] %v537
  %v539 = vld [vmem:[#allocation6] sm:$0xf]
  %v540 = vadd.f32 %v539, %v360
  %541 = vst [vmem:[#allocation6] sm:$0xf] %v540
  // Predicated region
  $region26: #{bcnn_loss.1} parent=0 // pred_check
    %p542 = pneg %p180
  $region27: #{bcnn_loss.1} parent=0 // pred_check_branch
    %544 = sbr.rel (%p542) target = $region29
  $region28: #{bcnn_loss.1} parent=0 // pred_region
    %v545 = vld [vmem:[#allocation2] sm:$0xf]
    %v548 = vunpack.c.l.s4 1983009808
    %v549 = vunpack.c.0.s8 %v548
    %v550 = vlaneseq
    %v551 = vshrl.u32 %v550, 7
    %v552 = vsub.s32 %v549, %v551
    %v553 = vrot.slane %v545, %v552
    %v554 = vcombine.high %v553, %v553
    %vm557 = vcmask 1041408
    %v558 = vsel %vm557, %v553, 0.0
    %v559 = vsel %vm557, %v554, 0.0
    %v560 = vadd.f32 %v558, %v559
    %561 = vadd.xlane.f32.xlu0 %v560
    %v562 = vpop.xlane.xlu0 %561
    %v563 = vrot.slane %v562, 4
    %v564 = vadd.f32 %v562, %v563
    %v565 = vrot.slane %v564, 2
    %v566 = vadd.f32 %v564, %v565
    %v567 = vrot.slane %v566, 1
    %v568 = vadd.f32 %v566, %v567
    %s569 = vtos %v568
    %s570 = smul.f32 %s569, 0.1
    %v571 = vld [vmem:[#allocation3] sm:$0xf]
    %v574 = vunpack.c.l.s4 1983009808
    %v575 = vunpack.c.0.s8 %v574
    %v576 = vlaneseq
    %v577 = vshrl.u32 %v576, 7
    %v578 = vsub.s32 %v575, %v577
    %v579 = vrot.slane %v571, %v578
    %v580 = vcombine.high %v579, %v579
    %v583 = vsel %vm557, %v579, 0.0
    %v584 = vsel %vm557, %v580, 0.0
    %v585 = vadd.f32 %v583, %v584
    %586 = vadd.xlane.f32.xlu0 %v585
    %v587 = vpop.xlane.xlu0 %586
    %v588 = vrot.slane %v587, 4
    %v589 = vadd.f32 %v587, %v588
    %v590 = vrot.slane %v589, 2
    %v591 = vadd.f32 %v589, %v590
    %v592 = vrot.slane %v591, 1
    %v593 = vadd.f32 %v591, %v592
    %s594 = vtos %v593
    %s595 = smul.f32 %s594, 0.1
    %v596 = vld [vmem:[#allocation4] sm:$0x3f]
    %v597 = vld [vmem:[#allocation4 + $0x8] sm:$0x3f]
    %v598 = vld [vmem:[#allocation4 + $0x10] sm:$0x3f]
    %v599 = vld [vmem:[#allocation4 + $0x18] sm:$0x3f]
    %vm600 = vcmask 1045504
    %v601 = vsel %vm600, %v596, 0.0
    %v602 = vsel %vm600, %v597, 0.0
    %v603 = vadd.f32 %v601, %v602
    %v604 = vsel %vm600, %v598, 0.0
    %v605 = vadd.f32 %v603, %v604
    %v606 = vsel %vm600, %v599, 0.0
    %v607 = vadd.f32 %v605, %v606
    %608 = vadd.xlane.f32.xlu0 %v607
    %v609 = vpop.xlane.xlu0 %608
    %v610 = vrot.slane %v609, 4
    %v611 = vadd.f32 %v609, %v610
    %v612 = vrot.slane %v611, 2
    %v613 = vadd.f32 %v611, %v612
    %v614 = vrot.slane %v613, 1
    %v615 = vadd.f32 %v613, %v614
    %s616 = vtos %v615
    %s617 = ssub.f32 0.0, %s616
    %s618 = smul.f32 %s617, 0.01
    %v619 = vld [vmem:[#allocation5] sm:$0xf]
    %v622 = vunpack.c.l.s4 1983009808
    %v623 = vunpack.c.0.s8 %v622
    %v624 = vlaneseq
    %v625 = vshrl.u32 %v624, 7
    %v626 = vsub.s32 %v623, %v625
    %v627 = vrot.slane %v619, %v626
    %v628 = vcombine.high %v627, %v627
    %v631 = vsel %vm557, %v627, 0.0
    %v632 = vsel %vm557, %v628, 0.0
    %v633 = vadd.f32 %v631, %v632
    %634 = vadd.xlane.f32.xlu0 %v633
    %v635 = vpop.xlane.xlu0 %634
    %v636 = vrot.slane %v635, 4
    %v637 = vadd.f32 %v635, %v636
    %v638 = vrot.slane %v637, 2
    %v639 = vadd.f32 %v637, %v638
    %v640 = vrot.slane %v639, 1
    %v641 = vadd.f32 %v639, %v640
    %s642 = vtos %v641
    %s643 = smul.f32 %s642, 5e-05
    %v644 = vld [vmem:[#allocation6] sm:$0xf]
    %v647 = vunpack.c.l.s4 1983009808
    %v648 = vunpack.c.0.s8 %v647
    %v649 = vlaneseq
    %v650 = vshrl.u32 %v649, 7
    %v651 = vsub.s32 %v648, %v650
    %v652 = vrot.slane %v644, %v651
    %v653 = vcombine.high %v652, %v652
    %v656 = vsel %vm557, %v652, 0.0
    %v657 = vsel %vm557, %v653, 0.0
    %v658 = vadd.f32 %v656, %v657
    %659 = vadd.xlane.f32.xlu0 %v658
    %v660 = vpop.xlane.xlu0 %659
    %v661 = vrot.slane %v660, 4
    %v662 = vadd.f32 %v660, %v661
    %v663 = vrot.slane %v662, 2
    %v664 = vadd.f32 %v662, %v663
    %v665 = vrot.slane %v664, 1
    %v666 = vadd.f32 %v664, %v665
    %s667 = vtos %v666
    %s668 = smul.f32 %s667, 7.5e-05
    %v669 = vstv %s570
    %v670 = vstv %s595
    %v671 = vstv %s618
    %v672 = vstv %s643
    %v673 = vstv %s668
    %vm674 = vcmask 1040384
    %v675 = vsel %vm674, %v669, %v670
    %v676 = vsel %vm557, %v675, %v671
    %vm677 = vcmask 1042432
    %v678 = vsel %vm677, %v676, %v672
    %v679 = vsel %vm405, %v678, %v673
    %vm680 = vcmask 1044480
    %v681 = vsel %vm680, %v679, 0.0
    %682 = vst [vmem:[%s5] sm:$0xff] %v681
  $region29: #{bcnn_loss.1} parent=0 // pred_fallthru
    _
  // Predicated region
  $region30: #{bcnn_loss.1} parent=0 // pred_check
    _
  $region31: #{bcnn_loss.1} parent=0 // pred_check_branch
    %684 = sbr.rel (0) target = $region33
  $region32: #{bcnn_loss.1} parent=0 // pred_region
    _
  $region33: #{bcnn_loss.1} parent=0 // pred_fallthru
    _
  // Predicated region
  $region34: #{bcnn_loss.1} parent=0 // pred_check
    _
  $region35: #{bcnn_loss.1} parent=0 // pred_check_branch
    %686 = sbr.rel (0) target = $region37
  $region36: #{bcnn_loss.1} parent=0 // pred_region
    _
  $region37: #{bcnn_loss.1} parent=0 // pred_fallthru
    _

</llo_original>
